<compile_context>
chip_gen: v7x
topology: tpu7x:2x2x1
jax: 0.10.0
libtpu: 0.0.40
codegen_flags: <defaults>
</compile_context>

<pallas_src>
import jax
import jax.numpy as jnp
import numpy as np
from jax.experimental import pallas as pl
from jax.experimental.pallas import tpu as pltpu

# ----------------------------- model dims (from the PyTorch module) -----------------------------
AGE_GROUPS = 21                      # len(age_groups)
SEX_CATS = 2                         # len(sex_categories)
OUT_DIM = AGE_GROUPS + SEX_CATS      # 23

NUM_INDIVIDUALS = 16
IN_FEATS = 10
HIDDEN = 32
OUT_FEATS = 16


# ----------------------------- Pallas kernel -----------------------------
def _ring_agg(h):
    """A_norm @ h for the symmetric {self, prev, next} ring graph (all degrees == 3).

    GraphConv(norm='both') with in/out degree 3 gives edge weight 3^-1/2 * 3^-1/2 = 1/3,
    so aggregation is the mean of a node's own message and its two ring neighbours.
    The sublane rolls are XLU work, the adds VPU work — no MXU / dense A involved.
    """
    n = h.shape[0]
    return (h + pltpu.roll(h, shift=1, axis=0) + pltpu.roll(h, shift=n - 1, axis=0)) * (1.0 / 3.0)


def gnn_kernel(x_ref, w1_ref, b1_ref, w2f_ref, bf_ref, o_ref):
    x = x_ref[...]                                                     # [N, in_feats]

    # layer1 / 'self_loop' GraphConv: relu(A_norm @ (X @ W1) + b1)
    h1 = jnp.dot(x, w1_ref[...], preferred_element_type=jnp.float32)  # [N, hidden]
    h1 = _ring_agg(h1) + b1_ref[...]
    h1 = jnp.maximum(h1, 0.0)

    # layer2 GraphConv folded with final_layer Linear:
    #   (A_norm @ (H1 @ W2) + b2) @ Wf^T + bf == A_norm @ (H1 @ (W2 @ Wf^T)) + (b2 @ Wf^T + bf)
    logits = jnp.dot(h1, w2f_ref[...], preferred_element_type=jnp.float32)  # [N, 23]
    logits = _ring_agg(logits) + bf_ref[...]

    # age softmax (21-way), written straight into the output slice
    age_logits = logits[:, :AGE_GROUPS]
    m = jnp.max(age_logits, axis=-1, keepdims=True)
    e = jnp.exp(age_logits - m)
    inv = pl.reciprocal(jnp.sum(e, axis=-1, keepdims=True), approx=False)
    o_ref[:, :AGE_GROUPS] = e * inv

    # sex softmax (2-way) == sigmoid pair: softmax([a, b]) = [sigmoid(a-b), sigmoid(b-a)]
    d = logits[:, AGE_GROUPS:AGE_GROUPS + 1] - logits[:, AGE_GROUPS + 1:AGE_GROUPS + 2]
    o_ref[:, AGE_GROUPS:AGE_GROUPS + 1] = 1.0 / (1.0 + jnp.exp(-d))
    o_ref[:, AGE_GROUPS + 1:] = 1.0 / (1.0 + jnp.exp(d))


def _full_spec(shape):
    zeros = (0,) * len(shape)
    return pl.BlockSpec(shape, lambda: zeros)   # full-array block (last dims == array dims)


@jax.jit
def gnn_forward(x_ind, w1, b1, w2, b2, wf_t, bf):
    # Fold the two purely-linear maps once in the wrapper (exact algebra, see kernel comment).
    w2f = w2 @ wf_t                 # [hidden, 23]
    bf_fold = b2 @ wf_t + bf        # [1, 23]
    operands = (x_ind, w1, b1, w2f, bf_fold)
    return pl.pallas_call(
        gnn_kernel,
        out_shape=jax.ShapeDtypeStruct((x_ind.shape[0], OUT_DIM), jnp.float32),
        grid=(),
        in_specs=[_full_spec(op.shape) for op in operands],
        out_specs=_full_spec((x_ind.shape[0], OUT_DIM)),
    )(*operands)


# ----------------------------- plain-JAX reference (unfolded, dense-A math) -----------------------------
def reference_forward(a_norm, x_ind, w1, b1, w2, b2, wf_t, bf):
    h1 = jnp.maximum(a_norm @ (x_ind @ w1) + b1, 0.0)
    h2 = a_norm @ (h1 @ w2) + b2
    logits = h2 @ wf_t + bf
    age = jax.nn.softmax(logits[:, :AGE_GROUPS], axis=-1)
    sex = jax.nn.softmax(logits[:, AGE_GROUPS:], axis=-1)
    return jnp.concatenate([age, sex], axis=-1)


# ----------------------------- example graph (glue, plain numpy) -----------------------------
def build_self_loop_adjacency(n):
    """Dense GraphConv(norm='both') message matrix for the example 'self_loop' relation.

    Edges: i -> i, i -> (i+1) % n, i -> (i-1) % n (symmetric ring + self edges), so every
    node has in-degree == out-degree == 3 (no zero-in-degree nodes, as DGL requires).
    Used only by the reference; the kernel exploits the structure via pltpu.roll.
    """
    idx = np.arange(n)
    src = np.concatenate([idx, idx, idx])
    dst = np.concatenate([idx, (idx + 1) % n, (idx - 1) % n])
    a = np.zeros((n, n), dtype=np.float32)    # a[dst, src]
    a[dst, src] = 1.0
    out_deg = a.sum(axis=0)                   # per source column
    in_deg = a.sum(axis=1)                    # per destination row
    a_norm = (in_deg[:, None] ** -0.5) * a * (out_deg[None, :] ** -0.5)
    return jnp.asarray(a_norm, dtype=jnp.float32)


if __name__ == "__main__":
    key = jax.random.PRNGKey(0)
    keys = jax.random.split(key, 8)

    # deterministic "parameters" (shapes from GNNModel.__init__)
    x_ind = jax.random.normal(keys[0], (NUM_INDIVIDUALS, IN_FEATS), jnp.float32)  # individual_embeddings
    # GraphConv('self_loop', in_feats -> hidden) weight/bias (layer1)
    w1 = jax.random.normal(keys[1], (IN_FEATS, HIDDEN), jnp.float32) * 0.2
    b1 = jax.random.normal(keys[2], (1, HIDDEN), jnp.float32) * 0.1
    # GraphConv('self_loop', hidden -> out_feats) weight/bias (layer2)
    w2 = jax.random.normal(keys[3], (HIDDEN, OUT_FEATS), jnp.float32) * 0.2
    b2 = jax.random.normal(keys[4], (1, OUT_FEATS), jnp.float32) * 0.1
    # final nn.Linear(out_feats, 23): torch weight is [23, out_feats]; pass transposed [out_feats, 23]
    wf_t = jax.random.normal(keys[5], (OUT_FEATS, OUT_DIM), jnp.float32) * 0.2
    bf = jax.random.normal(keys[6], (1, OUT_DIM), jnp.float32) * 0.1
    # TODO(synk): age_embeddings / sex_embeddings and the has_age / has_sex GraphConv weights are
    # dead w.r.t. the returned h['individual'] tensor (edges only flow individual -> age/sex),
    # so they are intentionally not instantiated.

    out = gnn_forward(x_ind, w1, b1, w2, b2, wf_t, bf)
    out = jax.block_until_ready(out)

    a_norm = build_self_loop_adjacency(NUM_INDIVIDUALS)
    ref = reference_forward(a_norm, x_ind, w1, b1, w2, b2, wf_t, bf)
    np.testing.assert_allclose(np.asarray(out), np.asarray(ref), rtol=1e-5, atol=1e-5)

    # sanity: each softmax group sums to 1 per row
    np.testing.assert_allclose(np.asarray(out)[:, :AGE_GROUPS].sum(-1), 1.0, rtol=1e-4, atol=1e-4)
    np.testing.assert_allclose(np.asarray(out)[:, AGE_GROUPS:].sum(-1), 1.0, rtol=1e-4, atol=1e-4)

    print("KERNEL_OK")
</pallas_src>

<mosaic_0001>
module attributes {stable_mosaic.version = 11 : i64} {
  func.func @gnn_kernel(%arg0: memref<16x10xf32, #tpu.memory_space<vmem>>, %arg1: memref<10x32xf32, #tpu.memory_space<vmem>>, %arg2: memref<1x32xf32, #tpu.memory_space<vmem>>, %arg3: memref<32x23xf32, #tpu.memory_space<vmem>>, %arg4: memref<1x23xf32, #tpu.memory_space<vmem>>, %arg5: memref<16x23xf32, #tpu.memory_space<vmem>>) attributes {dimension_semantics = [], scalar_prefetch = 0 : i64, scratch_operands = 0 : i64, tpu.core_type = #tpu.core_type<tc>} {
    %c0 = arith.constant 0 : index
    %c0_0 = arith.constant 0 : index
    %0 = vector.load %arg0[%c0, %c0_0] : memref<16x10xf32, #tpu.memory_space<vmem>>, vector<16x10xf32>
    %c0_1 = arith.constant 0 : index
    %c0_2 = arith.constant 0 : index
    %1 = vector.load %arg1[%c0_1, %c0_2] : memref<10x32xf32, #tpu.memory_space<vmem>>, vector<10x32xf32>
    %cst = arith.constant dense<0.000000e+00> : vector<16x32xf32>
    %2 = tpu.matmul %0, %1, %cst {dimension_numbers = #tpu.dot_dimension_numbers<[1], [0], [0], [1], [0, 0, 1, 1], [], []>} : vector<16x10xf32>, vector<10x32xf32>, vector<16x32xf32> -> vector<16x32xf32>
    %c1_i32 = arith.constant 1 : i32
    %3 = tpu.dynamic_rotate %2 by %c1_i32 dim 0 : vector<16x32xf32>, i32 -> vector<16x32xf32>
    %4 = arith.addf %2, %3 : vector<16x32xf32>
    %c15_i32 = arith.constant 15 : i32
    %5 = tpu.dynamic_rotate %2 by %c15_i32 dim 0 : vector<16x32xf32>, i32 -> vector<16x32xf32>
    %6 = arith.addf %4, %5 : vector<16x32xf32>
    %cst_3 = arith.constant 0.333333343 : f32
    %7 = vector.broadcast %cst_3 : f32 to vector<16x32xf32>
    %8 = arith.mulf %6, %7 : vector<16x32xf32>
    %c0_4 = arith.constant 0 : index
    %c0_5 = arith.constant 0 : index
    %9 = vector.load %arg2[%c0_4, %c0_5] : memref<1x32xf32, #tpu.memory_space<vmem>>, vector<1x32xf32>
    %10 = vector.broadcast %9 : vector<1x32xf32> to vector<16x32xf32>
    %11 = arith.addf %8, %10 : vector<16x32xf32>
    %cst_6 = arith.constant 0.000000e+00 : f32
    %12 = vector.broadcast %cst_6 : f32 to vector<16x32xf32>
    %13 = arith.maximumf %11, %12 : vector<16x32xf32>
    %c0_7 = arith.constant 0 : index
    %c0_8 = arith.constant 0 : index
    %14 = vector.load %arg3[%c0_7, %c0_8] : memref<32x23xf32, #tpu.memory_space<vmem>>, vector<32x23xf32>
    %cst_9 = arith.constant dense<0.000000e+00> : vector<16x23xf32>
    %15 = tpu.matmul %13, %14, %cst_9 {dimension_numbers = #tpu.dot_dimension_numbers<[1], [0], [0], [1], [0, 0, 1, 1], [], []>} : vector<16x32xf32>, vector<32x23xf32>, vector<16x23xf32> -> vector<16x23xf32>
    %c1_i32_10 = arith.constant 1 : i32
    %16 = tpu.dynamic_rotate %15 by %c1_i32_10 dim 0 : vector<16x23xf32>, i32 -> vector<16x23xf32>
    %17 = arith.addf %15, %16 : vector<16x23xf32>
    %c15_i32_11 = arith.constant 15 : i32
    %18 = tpu.dynamic_rotate %15 by %c15_i32_11 dim 0 : vector<16x23xf32>, i32 -> vector<16x23xf32>
    %19 = arith.addf %17, %18 : vector<16x23xf32>
    %cst_12 = arith.constant 0.333333343 : f32
    %20 = vector.broadcast %cst_12 : f32 to vector<16x23xf32>
    %21 = arith.mulf %19, %20 : vector<16x23xf32>
    %c0_13 = arith.constant 0 : index
    %c0_14 = arith.constant 0 : index
    %22 = vector.load %arg4[%c0_13, %c0_14] : memref<1x23xf32, #tpu.memory_space<vmem>>, vector<1x23xf32>
    %23 = vector.broadcast %22 : vector<1x23xf32> to vector<16x23xf32>
    %24 = arith.addf %21, %23 : vector<16x23xf32>
    %25 = vector.extract_strided_slice %24 {offsets = [0, 0], sizes = [16, 21], strides = [1, 1]} : vector<16x23xf32> to vector<16x21xf32>
    %cst_15 = arith.constant dense<0xFF800000> : vector<16xf32>
    %26 = vector.multi_reduction <maximumf>, %25, %cst_15 [1] : vector<16x21xf32> to vector<16xf32>
    %27 = vector.shape_cast %26 : vector<16xf32> to vector<16x1xf32>
    %28 = vector.broadcast %27 : vector<16x1xf32> to vector<16x21xf32>
    %29 = arith.subf %25, %28 : vector<16x21xf32>
    %30 = math.exp %29 : vector<16x21xf32>
    %cst_16 = arith.constant dense<0.000000e+00> : vector<16xf32>
    %31 = vector.multi_reduction <add>, %30, %cst_16 [1] : vector<16x21xf32> to vector<16xf32>
    %32 = vector.shape_cast %31 : vector<16xf32> to vector<16x1xf32>
    %33 = tpu.reciprocal %32 : vector<16x1xf32> -> vector<16x1xf32>
    %34 = vector.broadcast %33 : vector<16x1xf32> to vector<16x21xf32>
    %35 = arith.mulf %30, %34 : vector<16x21xf32>
    %c0_17 = arith.constant 0 : index
    %c0_18 = arith.constant 0 : index
    %36 = vector.load %arg5[%c0_17, %c0_18] : memref<16x23xf32, #tpu.memory_space<vmem>>, vector<16x21xf32>
    tpu.vector_store %arg5[%c0_17, %c0_18], %35 {strides = array<i32>} : memref<16x23xf32, #tpu.memory_space<vmem>>, vector<16x21xf32>,
    %37 = vector.extract_strided_slice %24 {offsets = [0, 21], sizes = [16, 1], strides = [1, 1]} : vector<16x23xf32> to vector<16x1xf32>
    %38 = vector.extract_strided_slice %24 {offsets = [0, 22], sizes = [16, 1], strides = [1, 1]} : vector<16x23xf32> to vector<16x1xf32>
    %39 = arith.subf %37, %38 : vector<16x1xf32>
    %cst_19 = arith.constant 0.000000e+00 : f32
    %40 = vector.broadcast %cst_19 : f32 to vector<16x1xf32>
    %41 = arith.subf %40, %39 : vector<16x1xf32>
    %42 = math.exp %41 : vector<16x1xf32>
    %cst_20 = arith.constant 1.000000e+00 : f32
    %43 = vector.broadcast %cst_20 : f32 to vector<16x1xf32>
    %44 = arith.addf %43, %42 : vector<16x1xf32>
    %cst_21 = arith.constant 1.000000e+00 : f32
    %45 = vector.broadcast %cst_21 : f32 to vector<16x1xf32>
    %46 = arith.divf %45, %44 : vector<16x1xf32>
    %c0_22 = arith.constant 0 : index
    %c21 = arith.constant 21 : index
    %47 = vector.load %arg5[%c0_22, %c21] : memref<16x23xf32, #tpu.memory_space<vmem>>, vector<16x1xf32>
    tpu.vector_store %arg5[%c0_22, %c21], %46 {strides = array<i32>} : memref<16x23xf32, #tpu.memory_space<vmem>>, vector<16x1xf32>,
    %48 = math.exp %39 : vector<16x1xf32>
    %cst_23 = arith.constant 1.000000e+00 : f32
    %49 = vector.broadcast %cst_23 : f32 to vector<16x1xf32>
    %50 = arith.addf %49, %48 : vector<16x1xf32>
    %cst_24 = arith.constant 1.000000e+00 : f32
    %51 = vector.broadcast %cst_24 : f32 to vector<16x1xf32>
    %52 = arith.divf %51, %50 : vector<16x1xf32>
    %c0_25 = arith.constant 0 : index
    %c22 = arith.constant 22 : index
    %53 = vector.load %arg5[%c0_25, %c22] : memref<16x23xf32, #tpu.memory_space<vmem>>, vector<16x1xf32>
    tpu.vector_store %arg5[%c0_25, %c22], %52 {strides = array<i32>} : memref<16x23xf32, #tpu.memory_space<vmem>>, vector<16x1xf32>,
    return
  }
}

</mosaic_0001>

<llo_original>
// kernel: gnn_forward.1
$region0: #{gnn_forward.1}
  #allocation0 [shape = 'u32[]', space=smem, size = 0x4, offset = 0x4, fixed_abs, tag = 'smem constant byte address 0x4 - core index']
  #allocation1 [shape = 'u32[144,128]{1,0:T(1,128)}', space=vmem, size = 0x12000, scoped, tag = 'internal scratch']
  %s0 = inlined_call_operand.vmem [shape: f32[16,10], index: 0, kind: input, shape index: {}]
  %s1 = inlined_call_operand.vmem [shape: f32[10,32], index: 1, kind: input, shape index: {}]
  %s2 = inlined_call_operand.vmem [shape: f32[1,32], index: 2, kind: input, shape index: {}]
  %s3 = inlined_call_operand.vmem [shape: f32[32,23], index: 3, kind: input, shape index: {}]
  %s4 = inlined_call_operand.vmem [shape: f32[1,23], index: 4, kind: input, shape index: {}]
  %s5 = inlined_call_operand.hbm [shape: f32[16,23], index: 5, kind: output, shape index: {}]
  %s6 = sld [smem:[#allocation0]]
  $region30: #{gnn_forward.1} parent=0
    _
  %s8 = ssub.s32 1, %s6
  %s9 = scalar_select 0, %s8, %s6
  $region1: #{gnn_forward.1} parent=0
    #allocation2 [shape = 'u8[8192]{0}', space=vmem, size = 0x2000, scoped, tag = 'output window, operand 0, single buffered']
    #allocation3 [shape = 's32[1]{0}', space=sflag, size = 0x4, scoped, tag = 'scoped memory for gnn_forward.1']
    %10 = vsyncpa [#allocation3], 0
    // Predicated region
    $region2: #{gnn_forward.1} parent=1 // pred_check
      _
    $region3: #{gnn_forward.1} parent=1 // pred_check_branch
      %12 = sbr.rel (0) target = $region5
    $region4: #{gnn_forward.1} parent=1 // pred_region
      _
    $region5: #{gnn_forward.1} parent=1 // pred_fallthru
      _
    // Predicated region
    $region6: #{gnn_forward.1} parent=1 // pred_check
      _
    $region7: #{gnn_forward.1} parent=1 // pred_check_branch
      %14 = sbr.rel (0) target = $region9
    $region8: #{gnn_forward.1} parent=1 // pred_region
      _
    $region9: #{gnn_forward.1} parent=1 // pred_fallthru
      _
    // Predicated region
    $region10: #{gnn_forward.1} parent=1 // pred_check
      _
    $region11: #{gnn_forward.1} parent=1 // pred_check_branch
      %16 = sbr.rel (0) target = $region13
    $region12: #{gnn_forward.1} parent=1 // pred_region
      _
    $region13: #{gnn_forward.1} parent=1 // pred_fallthru
      _
    // Predicated region
    $region14: #{gnn_forward.1} parent=1 // pred_check
      _
    $region15: #{gnn_forward.1} parent=1 // pred_check_branch
      %18 = sbr.rel (0) target = $region17
    $region16: #{gnn_forward.1} parent=1 // pred_region
      _
    $region17: #{gnn_forward.1} parent=1 // pred_fallthru
      _
    // Predicated region
    $region18: #{gnn_forward.1} parent=1 // pred_check
      _
    $region19: #{gnn_forward.1} parent=1 // pred_check_branch
      %20 = sbr.rel (0) target = $region21
    $region20: #{gnn_forward.1} parent=1 // pred_region
      _
    $region21: #{gnn_forward.1} parent=1 // pred_fallthru
      _
    %v21 = vld [vmem:[%s0] sm:$0xff]
    %v22 = vld [vmem:[%s0 + $0x8] sm:$0xff]
    %v23 = vld [vmem:[%s1] sm:$0xff]
    %v24 = vld [vmem:[%s1 + $0x8] sm:$0x3]
    %vm25 = vcmask 80896
    %v27 = vsel %vm25, %v21, 0
    %v30 = vsel %vm25, %v22, 0
    %vm32 = vcmask 1041408
    %v34 = vsel %vm32, %v24, 0
    %36 = vmatprep.subr.mxu0 0.0
    %37 = vmatpush1.msra.mxu0 %v23
    %38 = vmatprep.subr.mxu0 0.0
    %39 = vmatpush1.msra.mxu0 %v34
    %40 = vmatprep.subr.mxu0 0.0
    %41 = vmatpush1.msra.mxu0 0.0
    %42 = vmatprep.subr.mxu0 0.0
    %43 = vmatpush1.msra.mxu0 0.0
    %44 = vmatprep.subr.mxu0 0.0
    %45 = vmatpush1.msra.mxu0 0.0
    %46 = vmatprep.subr.mxu0 0.0
    %47 = vmatpush1.msra.mxu0 0.0
    %48 = vmatprep.subr.mxu0 0.0
    %49 = vmatpush1.msra.mxu0 0.0
    %50 = vmatprep.subr.mxu0 0.0
    %51 = vmatpush1.msra.mxu0 0.0
    %52 = vmatprep.subr.mxu0 0.0
    %53 = vmatpush1.msra.mxu0 0.0
    %54 = vmatprep.subr.mxu0 0.0
    %55 = vmatpush1.msra.mxu0 0.0
    %56 = vmatprep.subr.mxu0 0.0
    %57 = vmatpush1.msra.mxu0 0.0
    %58 = vmatprep.subr.mxu0 0.0
    %59 = vmatpush1.msra.mxu0 0.0
    %60 = vmatprep.subr.mxu0 0.0
    %61 = vmatpush1.msra.mxu0 0.0
    %62 = vmatprep.subr.mxu0 0.0
    %63 = vmatpush1.msra.mxu0 0.0
    %64 = vmatprep.subr.mxu0 0.0
    %65 = vmatpush1.msra.mxu0 0.0
    %66 = vmatprep.subr.mxu0 0.0
    %67 = vmatpush1.msra.mxu0 0.0
    %68 = vmatprep.subr.mxu0 0.0
    %69 = vmatpush1.msra.mxu0 0.0
    %70 = vmatprep.subr.mxu0 0.0
    %71 = vmatpush1.msra.mxu0 0.0
    %72 = vmatprep.subr.mxu0 0.0
    %73 = vmatpush1.msra.mxu0 0.0
    %74 = vmatprep.subr.mxu0 0.0
    %75 = vmatpush1.msra.mxu0 0.0
    %76 = vmatprep.subr.mxu0 0.0
    %77 = vmatpush1.msra.mxu0 0.0
    %78 = vmatprep.subr.mxu0 0.0
    %79 = vmatpush1.msra.mxu0 0.0
    %80 = vmatprep.subr.mxu0 0.0
    %81 = vmatpush1.msra.mxu0 0.0
    %82 = vmatprep.subr.mxu0 0.0
    %83 = vmatpush1.msra.mxu0 0.0
    %84 = vmatprep.subr.mxu0 0.0
    %85 = vmatpush1.msra.mxu0 0.0
    %86 = vmatprep.subr.mxu0 0.0
    %87 = vmatpush1.msra.mxu0 0.0
    %88 = vmatprep.subr.mxu0 0.0
    %89 = vmatpush1.msra.mxu0 0.0
    %90 = vmatprep.subr.mxu0 0.0
    %91 = vmatpush1.msra.mxu0 0.0
    %92 = vmatprep.subr.mxu0 0.0
    %93 = vmatpush1.msra.mxu0 0.0
    %94 = vmatprep.subr.mxu0 0.0
    %95 = vmatpush1.msra.mxu0 0.0
    %96 = vmatprep.subr.mxu0 0.0
    %97 = vmatpush1.msra.mxu0 0.0
    %98 = vmatprep.subr.mxu0 0.0
    %99 = vmatpush1.msra.mxu0 0.0
    %100 = vmatprep.mubr.f32.mxu0 0.0
    %101 = vmatmul.mubr.f32.gmra.mrb[0].mxu0 %v27
    %v102 = vpop.f32.mrb[0].mxu0
    %v103 = vadd.f32 0.0, %v102
    %v104 = vpop.f32.mrb[0].mxu0
    %105 = vmatprep.mubr.f32.mxu0 0.0
    %106 = vmatmul.mubr.f32.gmra.mrb[0].mxu0 %v30
    %v107 = vpop.f32.mrb[0].mxu0
    %v108 = vadd.f32 0.0, %v107
    %v109 = vpop.f32.mrb[0].mxu0
    %110 = vdwg.mxu0
    %v111 = vrot.slane %v103, 7
    %v112 = vrot.slane %v108, 7
    %v113 = vlaneseq
    %v114 = vshrl.u32 %v113, 7
    %vm115 = vcmp.lt.s32.totalorder %v114, 1
    %v116 = vsel %vm115, %v111, %v112
    %v117 = vsel %vm115, %v112, %v111
    %v118 = vadd.f32 %v103, %v117
    %v119 = vadd.f32 %v108, %v116
    %v120 = vrot.slane %v103, 1
    %v121 = vrot.slane %v108, 1
    %vm122 = vcmp.lt.s32.totalorder %v114, 7
    %v123 = vsel %vm122, %v120, %v121
    %v124 = vsel %vm122, %v121, %v120
    %v125 = vadd.f32 %v118, %v123
    %v126 = vadd.f32 %v119, %v124
    %v127 = vmul.f32 %v125, 0.33333334
    %v128 = vmul.f32 %v126, 0.33333334
    %v129 = vld [vmem:[%s2] sm:$0x1]
    %v131 = vlaneseq
    %v132 = vshrl.u32 %v131, 7
    %v133 = vsub.s32 0, %v132
    %v134 = vrot.slane %v129, %v133
    %v136 = vadd.f32 %v127, %v134
    %v137 = vadd.f32 %v128, %v134
    %v138 = vmax.f32 %v136, 0.0
    %v139 = vmax.f32 %v137, 0.0
    %v140 = vld [vmem:[%s3] sm:$0xff]
    %v141 = vld [vmem:[%s3 + $0x8] sm:$0xff]
    %v142 = vld [vmem:[%s3 + $0x10] sm:$0xff]
    %v143 = vld [vmem:[%s3 + $0x18] sm:$0xff]
    %vm144 = vcmask 261120
    %v146 = vsel %vm144, %v138, 0
    %v149 = vsel %vm144, %v139, 0
    %151 = vmatprep.subr.mxu0 0.0
    %152 = vmatpush1.msra.mxu0 %v140
    %153 = vmatprep.subr.mxu0 0.0
    %154 = vmatpush1.msra.mxu0 %v141
    %155 = vmatprep.subr.mxu0 0.0
    %156 = vmatpush1.msra.mxu0 %v142
    %157 = vmatprep.subr.mxu0 0.0
    %158 = vmatpush1.msra.mxu0 %v143
    %159 = vmatprep.subr.mxu0 0.0
    %160 = vmatpush1.msra.mxu0 0.0
    %161 = vmatprep.subr.mxu0 0.0
    %162 = vmatpush1.msra.mxu0 0.0
    %163 = vmatprep.subr.mxu0 0.0
    %164 = vmatpush1.msra.mxu0 0.0
    %165 = vmatprep.subr.mxu0 0.0
    %166 = vmatpush1.msra.mxu0 0.0
    %167 = vmatprep.subr.mxu0 0.0
    %168 = vmatpush1.msra.mxu0 0.0
    %169 = vmatprep.subr.mxu0 0.0
    %170 = vmatpush1.msra.mxu0 0.0
    %171 = vmatprep.subr.mxu0 0.0
    %172 = vmatpush1.msra.mxu0 0.0
    %173 = vmatprep.subr.mxu0 0.0
    %174 = vmatpush1.msra.mxu0 0.0
    %175 = vmatprep.subr.mxu0 0.0
    %176 = vmatpush1.msra.mxu0 0.0
    %177 = vmatprep.subr.mxu0 0.0
    %178 = vmatpush1.msra.mxu0 0.0
    %179 = vmatprep.subr.mxu0 0.0
    %180 = vmatpush1.msra.mxu0 0.0
    %181 = vmatprep.subr.mxu0 0.0
    %182 = vmatpush1.msra.mxu0 0.0
    %183 = vmatprep.subr.mxu0 0.0
    %184 = vmatpush1.msra.mxu0 0.0
    %185 = vmatprep.subr.mxu0 0.0
    %186 = vmatpush1.msra.mxu0 0.0
    %187 = vmatprep.subr.mxu0 0.0
    %188 = vmatpush1.msra.mxu0 0.0
    %189 = vmatprep.subr.mxu0 0.0
    %190 = vmatpush1.msra.mxu0 0.0
    %191 = vmatprep.subr.mxu0 0.0
    %192 = vmatpush1.msra.mxu0 0.0
    %193 = vmatprep.subr.mxu0 0.0
    %194 = vmatpush1.msra.mxu0 0.0
    %195 = vmatprep.subr.mxu0 0.0
    %196 = vmatpush1.msra.mxu0 0.0
    %197 = vmatprep.subr.mxu0 0.0
    %198 = vmatpush1.msra.mxu0 0.0
    %199 = vmatprep.subr.mxu0 0.0
    %200 = vmatpush1.msra.mxu0 0.0
    %201 = vmatprep.subr.mxu0 0.0
    %202 = vmatpush1.msra.mxu0 0.0
    %203 = vmatprep.subr.mxu0 0.0
    %204 = vmatpush1.msra.mxu0 0.0
    %205 = vmatprep.subr.mxu0 0.0
    %206 = vmatpush1.msra.mxu0 0.0
    %207 = vmatprep.subr.mxu0 0.0
    %208 = vmatpush1.msra.mxu0 0.0
    %209 = vmatprep.subr.mxu0 0.0
    %210 = vmatpush1.msra.mxu0 0.0
    %211 = vmatprep.subr.mxu0 0.0
    %212 = vmatpush1.msra.mxu0 0.0
    %213 = vmatprep.subr.mxu0 0.0
    %214 = vmatpush1.msra.mxu0 0.0
    %215 = vmatprep.mubr.f32.mxu0 0.0
    %216 = vmatmul.mubr.f32.gmra.mrb[0].mxu0 %v146
    %v217 = vpop.f32.mrb[0].mxu0
    %v218 = vadd.f32 0.0, %v217
    %v219 = vpop.f32.mrb[0].mxu0
    %220 = vmatprep.mubr.f32.mxu0 0.0
    %221 = vmatmul.mubr.f32.gmra.mrb[0].mxu0 %v149
    %v222 = vpop.f32.mrb[0].mxu0
    %v223 = vadd.f32 0.0, %v222
    %v224 = vpop.f32.mrb[0].mxu0
    %225 = vdwg.mxu0
    %v226 = vrot.slane %v218, 7
    %v227 = vrot.slane %v223, 7
    %v228 = vsel %vm115, %v226, %v227
    %v229 = vsel %vm115, %v227, %v226
    %v230 = vadd.f32 %v218, %v229
    %v231 = vadd.f32 %v223, %v228
    %v232 = vrot.slane %v218, 1
    %v233 = vrot.slane %v223, 1
    %v234 = vsel %vm122, %v232, %v233
    %v235 = vsel %vm122, %v233, %v232
    %v236 = vadd.f32 %v230, %v234
    %v237 = vadd.f32 %v231, %v235
    %v238 = vmul.f32 %v236, 0.33333334
    %v239 = vmul.f32 %v237, 0.33333334
    %v240 = vld [vmem:[%s4] sm:$0x1]
    %v242 = vlaneseq
    %v243 = vshrl.u32 %v242, 7
    %v244 = vsub.s32 0, %v243
    %v245 = vrot.slane %v240, %v244
    %v247 = vadd.f32 %v238, %v245
    %v248 = vadd.f32 %v239, %v245
    %vm249 = vcmask 171008
    %v250 = vsel %vm249, %v247, -inf
    %251 = vmax.xlane.f32.xlu0 %v250
    %v252 = vpop.xlane.xlu0 %251
    %v253 = vsel %vm249, %v248, -inf
    %254 = vmax.xlane.f32.xlu0 %v253
    %v255 = vpop.xlane.xlu0 %254
    %v256 = vsub.f32 %v247, %v252
    %v257 = vsub.f32 %v248, %v255
    %v258 = vmul.f32 %v256, 1.442695
    %v259 = vpow.pop %v258
    %v260 = vmul.f32 %v257, 1.442695
    %v261 = vpow.pop %v260
    %v262 = vsel %vm249, %v259, 0.0
    %263 = vadd.xlane.f32.xlu0 %v262
    %v264 = vpop.xlane.xlu0 %263
    %v265 = vsel %vm249, %v261, 0.0
    %266 = vadd.xlane.f32.xlu0 %v265
    %v267 = vpop.xlane.xlu0 %266
    %v268 = vrcp.pop %v264
    %v269 = vrcp.pop %v267
    %v270 = vmul.f32 %v259, %v268
    %v271 = vmul.f32 %v261, %v269
    %272 = vst.msk [vmem:[#allocation2] sm:$0xff] %vm249, %v270
    %273 = vst.msk [vmem:[#allocation2 + $0x8] sm:$0xff] %vm249, %v271
    %276 = vrot.lane.b32.xlu0 %v247, 127
    %v277 = vpop.permute.xlu0 %276
    %278 = vrot.lane.b32.xlu0 %v248, 127
    %v279 = vpop.permute.xlu0 %278
    %v282 = vsub.f32 %v247, %v277
    %v283 = vsub.f32 %v248, %v279
    %v284 = vsub.f32 0.0, %v282
    %v285 = vsub.f32 0.0, %v283
    %v286 = vmul.f32 %v284, 1.442695
    %v287 = vpow.pop %v286
    %v288 = vmul.f32 %v285, 1.442695
    %v289 = vpow.pop %v288
    %v290 = vadd.f32 %v287, 1.0
    %v291 = vadd.f32 %v289, 1.0
    %v292 = vrcp.pop %v290
    %v293 = vmul.f32 1.0, %v292
    %v294 = vrcp.pop %v291
    %v295 = vmul.f32 1.0, %v294
    %vm296 = vcmask 179368
    %297 = vst.msk [vmem:[#allocation2] sm:$0xff] %vm296, %v293
    %298 = vst.msk [vmem:[#allocation2 + $0x8] sm:$0xff] %vm296, %v295
    %v299 = vmul.f32 %v282, 1.442695
    %v300 = vpow.pop %v299
    %v301 = vmul.f32 %v283, 1.442695
    %v302 = vpow.pop %v301
    %v303 = vadd.f32 %v300, 1.0
    %v304 = vadd.f32 %v302, 1.0
    %v305 = vrcp.pop %v303
    %v306 = vmul.f32 1.0, %v305
    %v307 = vrcp.pop %v304
    %v308 = vmul.f32 1.0, %v307
    %311 = vrot.lane.b32.xlu0 %v306, 1
    %v312 = vpop.permute.xlu0 %311
    %313 = vrot.lane.b32.xlu0 %v308, 1
    %v314 = vpop.permute.xlu0 %313
    %vm317 = vcmask 187568
    %318 = vst.msk [vmem:[#allocation2] sm:$0xff] %vm317, %v312
    %319 = vst.msk [vmem:[#allocation2 + $0x8] sm:$0xff] %vm317, %v314
    // Predicated region
    $region22: #{gnn_forward.1} parent=1 // pred_check
      _
    $region23: #{gnn_forward.1} parent=1 // pred_check_branch
      %321 = sbr.rel (0) target = $region25
    $region24: #{gnn_forward.1} parent=1 // pred_region
      %s323 = ssub.s32 256, 256
      %324 = vsyncadd [#allocation3], %s323
      %s325 = sshll.u32 [#allocation2], 4
      %s326 = int_to_ptr.vmem [resolvable:$true] %s325
      %331 = dma.vmem_to_hbm [thread:$0]  %s326, 256, %s5, [#allocation3], 128, 128, 8
    $region25: #{gnn_forward.1} parent=1 // pred_fallthru
      _
    // Predicated region
    $region26: #{gnn_forward.1} parent=1 // pred_check
      _
    $region27: #{gnn_forward.1} parent=1 // pred_check_branch
      %333 = sbr.rel (0) target = $region29
    $region28: #{gnn_forward.1} parent=1 // pred_region
      %334 = dma.done [#allocation3], 256
    $region29: #{gnn_forward.1} parent=1 // pred_fallthru
      _
    %335 = vsyncpa [#allocation3], 1

</llo_original>
